<compile_context>
chip_gen: v5e
topology: v5e:2x2
jax: 0.10.0
libtpu: 0.0.40
codegen_flags: <defaults>
</compile_context>

<pallas_src>
import functools
import math

import jax
import jax.numpy as jnp
from jax.experimental import pallas as pl
from jax.experimental.pallas import tpu as pltpu


def _round_up(v, m):
    return ((v + m - 1) // m) * m


def _pad2(a, rows, cols):
    out = jnp.zeros((rows, cols), jnp.float32)
    return out.at[: a.shape[0], : a.shape[1]].set(a)


# ---------------------------------------------------------------------------
# Kernel A: fused projections (row-tiled over nodes).
#   h    = relu(x @ Win + bin)                     (lin_in)
#   cat  = h @ [W | W_src | W_dst]                 (one matmul, bias-free)
#   pp   = pos @ pos_nn.W1                         (hoisted layer-1, pos K->8)
#   src_feats = [ v | alpha_src | pp ]             (source stream, 128 lanes)
#   tgt_feats = [ alpha_dst | pp | 0-pad ]         (target stream, 128 lanes)
# ---------------------------------------------------------------------------
def _proj_kernel(x_ref, pos_ref, win_ref, bin_ref, wcat_ref, pw1_ref,
                 src_ref, tgt_ref):
    oc = wcat_ref.shape[1] // 3
    hh = pw1_ref.shape[1]

    h = jnp.dot(x_ref[...], win_ref[...], preferred_element_type=jnp.float32)
    h = jnp.maximum(h + bin_ref[...], 0.0)                                # [TM, IN_C]
    cat = jnp.dot(h, wcat_ref[...], preferred_element_type=jnp.float32)  # [TM, 3*OC]
    pp = jnp.dot(pos_ref[...], pw1_ref[...],
                 preferred_element_type=jnp.float32)                     # [TM, HH]

    src_ref[:, 0:2 * oc] = cat[:, 0:2 * oc]            # v | alpha_src
    src_ref[:, 2 * oc:2 * oc + hh] = pp
    if 2 * oc + hh < src_ref.shape[1]:                  # static pad region
        src_ref[:, 2 * oc + hh:] = jnp.zeros(
            (src_ref.shape[0], src_ref.shape[1] - 2 * oc - hh), jnp.float32)

    tgt_ref[:, 0:oc] = cat[:, 2 * oc:3 * oc]           # alpha_dst
    tgt_ref[:, oc:oc + hh] = pp
    if oc + hh < tgt_ref.shape[1]:
        tgt_ref[:, oc + hh:] = jnp.zeros(
            (tgt_ref.shape[0], tgt_ref.shape[1] - oc - hh), jnp.float32)


# ---------------------------------------------------------------------------
# Kernel B: PointTransformerConv + fused lin_out.
# Grid = (target tiles [parallel], source blocks [arbitrary]).
# Per-block edge counts are scalar-prefetched; empty blocks skip all message /
# softmax work.  Online (flash-style) masked softmax accumulates in VMEM
# scratch; finalize applies 1/denom and lin_out(+ReLU) lane-dense (128 wide).
# ---------------------------------------------------------------------------
def _conv_kernel(counts_ref, tgt_ref, src_ref, adj_ref,
                 pb1_ref, pw2_ref, pb2_ref,
                 aw1_ref, ab1_ref, aw2_ref, ab2_ref,
                 wout_ref, bout_ref,
                 o_ref, m_sc, l_sc, acc_sc, *, mlp_dtype):
    t = tgt_ref.shape[0]
    s = src_ref.shape[0]
    hh = pw2_ref.shape[0]
    oc = pw2_ref.shape[1]
    ts = t * s
    i = pl.program_id(0)
    j = pl.program_id(1)
    ns = pl.num_programs(1)
    neg = jnp.float32(-1e30)

    @pl.when(j == 0)
    def _():
        m_sc[...] = jnp.full(m_sc.shape, neg, jnp.float32)
        l_sc[...] = jnp.zeros(l_sc.shape, jnp.float32)
        acc_sc[...] = jnp.zeros(acc_sc.shape, jnp.float32)

    # ---- block-sparse skip: only do work if this (i, j) block has edges ----
    @pl.when(counts_ref[i * ns + j] > 0)
    def _():
        a_dst = tgt_ref[:, 0:oc]                   # [T, OC]
        pp_t = tgt_ref[:, oc:oc + hh]              # [T, HH]
        v = src_ref[:, 0:oc]                       # [S, OC]
        a_src = src_ref[:, oc:2 * oc]              # [S, OC]
        pp_s = src_ref[:, 2 * oc:2 * oc + hh]      # [S, HH]
        mask = adj_ref[...] > 0                    # [T, S] bool (int8 input)
        maskf = mask[:, :, None]

        # pos_nn: layer-1 matmul hoisted to Kernel A; bias/ReLU/layer-2 here.
        d1 = (pp_t[:, None, :] - pp_s[None, :, :]).reshape(ts, hh)
        h1 = jnp.maximum(d1 + pb1_ref[...], 0.0)                           # [TS, HH]
        delta = jnp.dot(h1.astype(mlp_dtype), pw2_ref[...].astype(mlp_dtype),
                        preferred_element_type=jnp.float32)
        delta = jnp.maximum(delta + pb2_ref[...], 0.0)                     # [TS, OC]

        # attn_nn(alpha_dst_i - alpha_src_j + delta)
        a_in = (a_dst[:, None, :] - a_src[None, :, :]).reshape(ts, oc) + delta
        ah = jnp.dot(a_in.astype(mlp_dtype), aw1_ref[...].astype(mlp_dtype),
                     preferred_element_type=jnp.float32)
        ah = jnp.maximum(ah + ab1_ref[...], 0.0)                           # [TS, HH]
        e = jnp.dot(ah.astype(mlp_dtype), aw2_ref[...].astype(mlp_dtype),
                    preferred_element_type=jnp.float32)
        e = jnp.maximum(e + ab2_ref[...], 0.0)                             # [TS, OC]

        e3 = e.reshape(t, s, oc)
        delta3 = delta.reshape(t, s, oc)
        e_m = jnp.where(maskf, e3, neg)

        # online masked softmax over source nodes (per target, per channel)
        m_prev = m_sc[...]
        m_new = jnp.maximum(m_prev, jnp.max(e_m, axis=1))                  # [T, OC]
        scale = jnp.exp(m_prev - m_new)
        # NOTE: the mask multiply is load-bearing (rows whose running max is
        # still -1e30 would otherwise add exp(0)=1) -- do not remove.
        p = jnp.exp(e_m - m_new[:, None, :]) * maskf.astype(jnp.float32)   # [T, S, OC]
        l_sc[...] = scale * l_sc[...] + jnp.sum(p, axis=1)
        acc_sc[...] = scale * acc_sc[...] + jnp.sum(p * (v[None, :, :] + delta3),
                                                    axis=1)
        m_sc[...] = m_new

    @pl.when(j == ns - 1)
    def _():
        denom = jnp.maximum(l_sc[...], jnp.float32(1e-20))   # guard all-masked rows
        agg = acc_sc[...] * pl.reciprocal(denom, approx=False)             # [T, OC]
        y = jnp.dot(agg, wout_ref[...], preferred_element_type=jnp.float32)
        o_ref[...] = jnp.maximum(y + bout_ref[...], 0.0).astype(o_ref.dtype)


# ---------------------------------------------------------------------------
# Wrapper: padding / packing (trace-time, tiny) + the two pallas_calls.
# ---------------------------------------------------------------------------
def transformer_block(x, pos, adj, params, *, t_tile=32, s_blk=128,
                      use_bf16_mlp=False):
    # t_tile multiple of 32 (native int8 sublane tile), s_blk multiple of 128.
    # Defaults (32, 128) keep the ~10 live [T*S, *] intermediates well under
    # v7x's 64 MiB VMEM; raise s_blk to 256 on v5e/v6e if desired.
    assert t_tile % 32 == 0 and s_blk % 128 == 0
    n, in_c = x.shape
    oc = params["lin_w"].shape[1]
    hh = params["pw1"].shape[1]
    src_w = _round_up(2 * oc + hh, 128)    # 32+32+64 -> 128 (packed, lane-dense)
    tgt_w = _round_up(oc + hh, 128)        # 32+64    -> 128
    out_w = _round_up(oc, 128)             # lane-dense output store

    n_pad = _round_up(n, math.lcm(t_tile, s_blk))

    # ---- weights: native widths, only the padded-K pos layer-1 and the
    #      lane-dense lin_out get zero-padding ----
    win = params["lin_in_w"].astype(jnp.float32)
    b_in = params["lin_in_b"].astype(jnp.float32)
    wcat = jnp.concatenate(
        [params["lin_w"], params["lin_src_w"], params["lin_dst_w"]],
        axis=1).astype(jnp.float32)                               # (in_c, 3*oc)
    pw1 = _pad2(params["pw1"], 8, hh)                             # K padded 3 -> 8
    pb1 = params["pb1"].astype(jnp.float32)
    pw2 = params["pw2"].astype(jnp.float32)
    pb2 = params["pb2"].astype(jnp.float32)
    aw1 = params["aw1"].astype(jnp.float32)
    ab1 = params["ab1"].astype(jnp.float32)
    aw2 = params["aw2"].astype(jnp.float32)
    ab2 = params["ab2"].astype(jnp.float32)
    wout = _pad2(params["lin_out_w"], oc, out_w)
    bout = _pad2(params["lin_out_b"], 1, out_w)

    # ---- node streams padded to n_pad rows; adjacency as int8 mask ----
    x_p = jnp.zeros((n_pad, in_c), jnp.float32).at[:n].set(x)
    pos_p = jnp.zeros((n_pad, 8), jnp.float32).at[:n, :3].set(pos)
    adj_p = jnp.zeros((n_pad, n_pad), jnp.float32).at[:n, :n].set(adj)
    adj_i8 = (adj_p > 0).astype(jnp.int8)

    nt = n_pad // t_tile
    ns = n_pad // s_blk
    # Per-(target-tile, source-block) edge counts for block-sparse skipping.
    counts = (adj_p.reshape(nt, t_tile, ns, s_blk) > 0).sum(axis=(1, 3))
    counts = counts.astype(jnp.int32).reshape(-1)

    # ---- Kernel A: fused projections, row-tiled / parallel ----
    tm = 256 if n_pad % 256 == 0 else 128
    src_feats, tgt_feats = pl.pallas_call(
        _proj_kernel,
        out_shape=(jax.ShapeDtypeStruct((n_pad, src_w), jnp.float32),
                   jax.ShapeDtypeStruct((n_pad, tgt_w), jnp.float32)),
        grid=(n_pad // tm,),
        in_specs=[
            pl.BlockSpec((tm, in_c), lambda r: (r, 0)),
            pl.BlockSpec((tm, 8), lambda r: (r, 0)),
            pl.BlockSpec((in_c, in_c), lambda r: (0, 0)),
            pl.BlockSpec((1, in_c), lambda r: (0, 0)),
            pl.BlockSpec((in_c, 3 * oc), lambda r: (0, 0)),
            pl.BlockSpec((8, hh), lambda r: (0, 0)),
        ],
        out_specs=(pl.BlockSpec((tm, src_w), lambda r: (r, 0)),
                   pl.BlockSpec((tm, tgt_w), lambda r: (r, 0))),
        compiler_params=pltpu.CompilerParams(dimension_semantics=("parallel",)),
    )(x_p, pos_p, win, b_in, wcat, pw1)

    # ---- Kernel B: conv + fused lin_out, block-sparse over (i, j) ----
    # bf16 MXU inputs for the per-pair MLP matmuls are available behind this
    # flag; kept off by default to stay inside the 1e-3 correctness check.
    mlp_dtype = jnp.bfloat16 if use_bf16_mlp else jnp.float32
    kern = functools.partial(_conv_kernel, mlp_dtype=mlp_dtype)

    grid_spec = pltpu.PrefetchScalarGridSpec(
        num_scalar_prefetch=1,
        grid=(nt, ns),
        in_specs=[
            pl.BlockSpec((t_tile, tgt_w), lambda i, j, c: (i, 0)),   # tgt feats
            pl.BlockSpec((s_blk, src_w), lambda i, j, c: (j, 0)),    # src feats
            pl.BlockSpec((t_tile, s_blk), lambda i, j, c: (i, j)),   # adjacency (int8)
            pl.BlockSpec((1, hh), lambda i, j, c: (0, 0)),           # pb1
            pl.BlockSpec((hh, oc), lambda i, j, c: (0, 0)),          # pw2
            pl.BlockSpec((1, oc), lambda i, j, c: (0, 0)),           # pb2
            pl.BlockSpec((oc, hh), lambda i, j, c: (0, 0)),          # aw1
            pl.BlockSpec((1, hh), lambda i, j, c: (0, 0)),           # ab1
            pl.BlockSpec((hh, oc), lambda i, j, c: (0, 0)),          # aw2
            pl.BlockSpec((1, oc), lambda i, j, c: (0, 0)),           # ab2
            pl.BlockSpec((oc, out_w), lambda i, j, c: (0, 0)),       # lin_out W (padded)
            pl.BlockSpec((1, out_w), lambda i, j, c: (0, 0)),        # lin_out b (padded)
        ],
        out_specs=pl.BlockSpec((t_tile, out_w), lambda i, j, c: (i, 0)),
        scratch_shapes=[pltpu.VMEM((t_tile, oc), jnp.float32)] * 3,  # m, l, acc
    )

    out_p = pl.pallas_call(
        kern,
        out_shape=jax.ShapeDtypeStruct((n_pad, out_w), jnp.float32),
        grid_spec=grid_spec,
        compiler_params=pltpu.CompilerParams(
            dimension_semantics=("parallel", "arbitrary"),
            vmem_limit_bytes=40 * 1024 * 1024),
    )(counts, tgt_feats, src_feats, adj_i8,
      pb1, pw2, pb2, aw1, ab1, aw2, ab2, wout, bout)

    return out_p[:n, :oc]


# ---------------------------------------------------------------------------
# Pure-JAX reference (independent dense formulation) for correctness checking.
# ---------------------------------------------------------------------------
def transformer_block_ref(x, pos, adj, p):
    x = jnp.maximum(x @ p["lin_in_w"] + p["lin_in_b"], 0.0)
    v = x @ p["lin_w"]
    a_src = x @ p["lin_src_w"]
    a_dst = x @ p["lin_dst_w"]
    rel = pos[:, None, :] - pos[None, :, :]                       # [N, N, 3]
    hp_ = jnp.maximum(rel @ p["pw1"] + p["pb1"], 0.0)
    delta = jnp.maximum(hp_ @ p["pw2"] + p["pb2"], 0.0)           # [N, N, C]
    a_in = a_dst[:, None, :] - a_src[None, :, :] + delta
    ha = jnp.maximum(a_in @ p["aw1"] + p["ab1"], 0.0)
    e = jnp.maximum(ha @ p["aw2"] + p["ab2"], 0.0)                # [N, N, C]
    mask = adj[:, :, None] > 0
    e_m = jnp.where(mask, e, -1e30)
    m = e_m.max(axis=1, keepdims=True)
    pw = jnp.exp(e_m - m) * adj[:, :, None]
    attn = pw / pw.sum(axis=1, keepdims=True)
    out = (attn * (v[None, :, :] + delta)).sum(axis=1)
    return jnp.maximum(out @ p["lin_out_w"] + p["lin_out_b"], 0.0)


if __name__ == "__main__":
    N, IN_C, OUT_C, H = 16, 8, 32, 64

    key = jax.random.PRNGKey(0)
    ks = jax.random.split(key, 20)

    def init(k, shape, fan_in):
        return jax.random.normal(k, shape, jnp.float32) / jnp.sqrt(jnp.float32(fan_in))

    params = {
        "lin_in_w": init(ks[0], (IN_C, IN_C), IN_C),
        "lin_in_b": init(ks[1], (1, IN_C), IN_C),
        "lin_out_w": init(ks[2], (OUT_C, OUT_C), OUT_C),
        "lin_out_b": init(ks[3], (1, OUT_C), OUT_C),
        "lin_w": init(ks[4], (IN_C, OUT_C), IN_C),        # value proj (no bias)
        "lin_src_w": init(ks[5], (IN_C, OUT_C), IN_C),    # alpha src proj (no bias)
        "lin_dst_w": init(ks[6], (IN_C, OUT_C), IN_C),    # alpha dst proj (no bias)
        "pw1": init(ks[7], (3, H), 3),
        "pb1": init(ks[8], (1, H), 3),
        "pw2": init(ks[9], (H, OUT_C), H),
        "pb2": init(ks[10], (1, OUT_C), H),
        "aw1": init(ks[11], (OUT_C, H), OUT_C),
        "ab1": init(ks[12], (1, H), OUT_C),
        "aw2": init(ks[13], (H, OUT_C), H),
        "ab2": init(ks[14], (1, OUT_C), H),
    }

    x = jax.random.normal(ks[15], (N, IN_C), jnp.float32)
    pos = jax.random.normal(ks[16], (N, 3), jnp.float32)

    # Deterministic edge_index [2, E] (source row 0, target row 1), k=3 graph.
    # TODO(synk): dynamic edge_index gather/scatter is represented as a dense
    # int8 adjacency mask (with self loops), matching PointTransformerConv's
    # remove-then-add-self-loops behavior.
    src, tgt = [], []
    for i in range(N):
        for off in (1, 3, 5):
            src.append((i + off) % N)
            tgt.append(i)
    edge_index = jnp.array([src, tgt], dtype=jnp.int32)

    adj = jnp.zeros((N, N), jnp.float32).at[edge_index[1], edge_index[0]].set(1.0)
    adj = adj * (1.0 - jnp.eye(N, dtype=jnp.float32)) + jnp.eye(N, dtype=jnp.float32)

    out = transformer_block(x, pos, adj, params)
    out = jax.block_until_ready(out)

    ref = transformer_block_ref(x, pos, adj, params)
    assert out.shape == (N, OUT_C)
    assert jnp.allclose(out, ref, rtol=1e-3, atol=1e-3), "mismatch vs reference"

    print("KERNEL_OK")
</pallas_src>

<mosaic_0001>
module attributes {stable_mosaic.version = 11 : i64} {
  func.func @_proj_kernel(%arg0: i32, %arg1: memref<128x8xf32, #tpu.memory_space<vmem>>, %arg2: memref<128x8xf32, #tpu.memory_space<vmem>>, %arg3: memref<8x8xf32, #tpu.memory_space<vmem>>, %arg4: memref<1x8xf32, #tpu.memory_space<vmem>>, %arg5: memref<8x96xf32, #tpu.memory_space<vmem>>, %arg6: memref<8x64xf32, #tpu.memory_space<vmem>>, %arg7: memref<128x128xf32, #tpu.memory_space<vmem>>, %arg8: memref<128x128xf32, #tpu.memory_space<vmem>>) attributes {dimension_semantics = [#tpu.dimension_semantics<parallel>], iteration_bounds = array<i64: 1>, scalar_prefetch = 0 : i64, scratch_operands = 0 : i64, tpu.core_type = #tpu.core_type<tc>, window_params = [{transform_indices = @transform_0, window_bounds = array<i64: 128, 8>}, {transform_indices = @transform_1, window_bounds = array<i64: 128, 8>}, {pipeline_mode = #tpu.pipeline_mode<synchronous>, transform_indices = @transform_2, window_bounds = array<i64: 8, 8>}, {pipeline_mode = #tpu.pipeline_mode<synchronous>, transform_indices = @transform_3, window_bounds = array<i64: 1, 8>}, {pipeline_mode = #tpu.pipeline_mode<synchronous>, transform_indices = @transform_4, window_bounds = array<i64: 8, 96>}, {pipeline_mode = #tpu.pipeline_mode<synchronous>, transform_indices = @transform_5, window_bounds = array<i64: 8, 64>}, {transform_indices = @transform_6, window_bounds = array<i64: 128, 128>}, {transform_indices = @transform_7, window_bounds = array<i64: 128, 128>}]} {
    %c0 = arith.constant 0 : index
    %c0_0 = arith.constant 0 : index
    %0 = vector.load %arg1[%c0, %c0_0] : memref<128x8xf32, #tpu.memory_space<vmem>>, vector<128x8xf32>
    %c0_1 = arith.constant 0 : index
    %c0_2 = arith.constant 0 : index
    %1 = vector.load %arg3[%c0_1, %c0_2] : memref<8x8xf32, #tpu.memory_space<vmem>>, vector<8x8xf32>
    %cst = arith.constant dense<0.000000e+00> : vector<128x8xf32>
    %2 = tpu.matmul %0, %1, %cst {dimension_numbers = #tpu.dot_dimension_numbers<[1], [0], [0], [1], [0, 0, 1, 1], [], []>} : vector<128x8xf32>, vector<8x8xf32>, vector<128x8xf32> -> vector<128x8xf32>
    %c0_3 = arith.constant 0 : index
    %c0_4 = arith.constant 0 : index
    %3 = vector.load %arg4[%c0_3, %c0_4] : memref<1x8xf32, #tpu.memory_space<vmem>>, vector<1x8xf32>
    %4 = vector.broadcast %3 : vector<1x8xf32> to vector<128x8xf32>
    %5 = arith.addf %2, %4 : vector<128x8xf32>
    %cst_5 = arith.constant 0.000000e+00 : f32
    %6 = vector.broadcast %cst_5 : f32 to vector<128x8xf32>
    %7 = arith.maximumf %5, %6 : vector<128x8xf32>
    %c0_6 = arith.constant 0 : index
    %c0_7 = arith.constant 0 : index
    %8 = vector.load %arg5[%c0_6, %c0_7] : memref<8x96xf32, #tpu.memory_space<vmem>>, vector<8x96xf32>
    %cst_8 = arith.constant dense<0.000000e+00> : vector<128x96xf32>
    %9 = tpu.matmul %7, %8, %cst_8 {dimension_numbers = #tpu.dot_dimension_numbers<[1], [0], [0], [1], [0, 0, 1, 1], [], []>} : vector<128x8xf32>, vector<8x96xf32>, vector<128x96xf32> -> vector<128x96xf32>
    %c0_9 = arith.constant 0 : index
    %c0_10 = arith.constant 0 : index
    %10 = vector.load %arg2[%c0_9, %c0_10] : memref<128x8xf32, #tpu.memory_space<vmem>>, vector<128x8xf32>
    %c0_11 = arith.constant 0 : index
    %c0_12 = arith.constant 0 : index
    %11 = vector.load %arg6[%c0_11, %c0_12] : memref<8x64xf32, #tpu.memory_space<vmem>>, vector<8x64xf32>
    %cst_13 = arith.constant dense<0.000000e+00> : vector<128x64xf32>
    %12 = tpu.matmul %10, %11, %cst_13 {dimension_numbers = #tpu.dot_dimension_numbers<[1], [0], [0], [1], [0, 0, 1, 1], [], []>} : vector<128x8xf32>, vector<8x64xf32>, vector<128x64xf32> -> vector<128x64xf32>
    %13 = vector.extract_strided_slice %9 {offsets = [0, 0], sizes = [128, 64], strides = [1, 1]} : vector<128x96xf32> to vector<128x64xf32>
    %c0_14 = arith.constant 0 : index
    %c0_15 = arith.constant 0 : index
    %14 = vector.load %arg7[%c0_14, %c0_15] : memref<128x128xf32, #tpu.memory_space<vmem>>, vector<128x64xf32>
    tpu.vector_store %arg7[%c0_14, %c0_15], %13 {strides = array<i32>} : memref<128x128xf32, #tpu.memory_space<vmem>>, vector<128x64xf32>,
    %c0_16 = arith.constant 0 : index
    %c64 = arith.constant 64 : index
    %15 = vector.load %arg7[%c0_16, %c64] : memref<128x128xf32, #tpu.memory_space<vmem>>, vector<128x64xf32>
    tpu.vector_store %arg7[%c0_16, %c64], %12 {strides = array<i32>} : memref<128x128xf32, #tpu.memory_space<vmem>>, vector<128x64xf32>,
    %16 = vector.extract_strided_slice %9 {offsets = [0, 64], sizes = [128, 32], strides = [1, 1]} : vector<128x96xf32> to vector<128x32xf32>
    %c0_17 = arith.constant 0 : index
    %c0_18 = arith.constant 0 : index
    %17 = vector.load %arg8[%c0_17, %c0_18] : memref<128x128xf32, #tpu.memory_space<vmem>>, vector<128x32xf32>
    tpu.vector_store %arg8[%c0_17, %c0_18], %16 {strides = array<i32>} : memref<128x128xf32, #tpu.memory_space<vmem>>, vector<128x32xf32>,
    %c0_19 = arith.constant 0 : index
    %c32 = arith.constant 32 : index
    %18 = vector.load %arg8[%c0_19, %c32] : memref<128x128xf32, #tpu.memory_space<vmem>>, vector<128x64xf32>
    tpu.vector_store %arg8[%c0_19, %c32], %12 {strides = array<i32>} : memref<128x128xf32, #tpu.memory_space<vmem>>, vector<128x64xf32>,
    %cst_20 = arith.constant 0.000000e+00 : f32
    %19 = vector.broadcast %cst_20 : f32 to vector<128x32xf32>
    %c0_21 = arith.constant 0 : index
    %c96 = arith.constant 96 : index
    %20 = vector.load %arg8[%c0_21, %c96] : memref<128x128xf32, #tpu.memory_space<vmem>>, vector<128x32xf32>
    tpu.vector_store %arg8[%c0_21, %c96], %19 {strides = array<i32>} : memref<128x128xf32, #tpu.memory_space<vmem>>, vector<128x32xf32>,
    return
  }
  func.func @transform_0(%arg0: i32) -> (i32, i32) {
    %c0_i32 = arith.constant 0 : i32
    %c0_i32_0 = arith.constant 0 : i32
    return %arg0, %c0_i32 : i32, i32
  }
  func.func @transform_1(%arg0: i32) -> (i32, i32) {
    %c0_i32 = arith.constant 0 : i32
    %c0_i32_0 = arith.constant 0 : i32
    return %arg0, %c0_i32 : i32, i32
  }
  func.func @transform_2(%arg0: i32) -> (i32, i32) {
    %c0_i32 = arith.constant 0 : i32
    %c0_i32_0 = arith.constant 0 : i32
    %c0_i32_1 = arith.constant 0 : i32
    return %c0_i32, %c0_i32_0 : i32, i32
  }
  func.func @transform_3(%arg0: i32) -> (i32, i32) {
    %c0_i32 = arith.constant 0 : i32
    %c0_i32_0 = arith.constant 0 : i32
    %c0_i32_1 = arith.constant 0 : i32
    return %c0_i32, %c0_i32_0 : i32, i32
  }
  func.func @transform_4(%arg0: i32) -> (i32, i32) {
    %c0_i32 = arith.constant 0 : i32
    %c0_i32_0 = arith.constant 0 : i32
    %c0_i32_1 = arith.constant 0 : i32
    return %c0_i32, %c0_i32_0 : i32, i32
  }
  func.func @transform_5(%arg0: i32) -> (i32, i32) {
    %c0_i32 = arith.constant 0 : i32
    %c0_i32_0 = arith.constant 0 : i32
    %c0_i32_1 = arith.constant 0 : i32
    return %c0_i32, %c0_i32_0 : i32, i32
  }
  func.func @transform_6(%arg0: i32) -> (i32, i32) {
    %c0_i32 = arith.constant 0 : i32
    %c0_i32_0 = arith.constant 0 : i32
    return %arg0, %c0_i32 : i32, i32
  }
  func.func @transform_7(%arg0: i32) -> (i32, i32) {
    %c0_i32 = arith.constant 0 : i32
    %c0_i32_0 = arith.constant 0 : i32
    return %arg0, %c0_i32 : i32, i32
  }
}

</mosaic_0001>

<llo_original>
// kernel: tpu_custom_call.1
$region0: #{tpu_custom_call.1}
  #allocation0 [shape = 'u32[]', space=smem, size = 0x4, offset = 0x4, fixed_abs, tag = 'smem constant byte address 0x4 - core index']
  #allocation1 [shape = 'u32[72,128]{1,0:T(1,128)}', space=vmem, size = 0x9000, scoped, tag = 'internal scratch']
  %s0 = inlined_call_operand.vmem [shape: f32[128,8], index: 0, kind: input, shape index: {}]
  %s1 = inlined_call_operand.vmem [shape: f32[128,8], index: 1, kind: input, shape index: {}]
  %s2 = inlined_call_operand.vmem [shape: f32[8,8], index: 2, kind: input, shape index: {}]
  %s3 = inlined_call_operand.vmem [shape: f32[1,8], index: 3, kind: input, shape index: {}]
  %s4 = inlined_call_operand.vmem [shape: f32[8,96], index: 4, kind: input, shape index: {}]
  %s5 = inlined_call_operand.vmem [shape: f32[8,64], index: 5, kind: input, shape index: {}]
  %s6 = inlined_call_operand.hbm [shape: f32[128,128], index: 6, kind: output, shape index: {0}]
  %s7 = inlined_call_operand.hbm [shape: f32[128,128], index: 7, kind: output, shape index: {1}]
  %8 = xla_tuple %s6, %s7
  %s9 = sld [smem:[#allocation0]]
  $region42: #{tpu_custom_call.1} parent=0
    _
  %s11 = ssub.s32 1, %s9
  %s12 = scalar_select 0, %s11, %s9
  $region1: #{tpu_custom_call.1} parent=0
    #allocation2 [shape = 'u8[65536]{0}', space=vmem, size = 0x10000, scoped, tag = 'output window, operand 0, single buffered']
    #allocation3 [shape = 's32[1]{0}', space=sflag, size = 0x4, scoped, tag = 'scoped memory for tpu_custom_call.1']
    #allocation4 [shape = 'u8[65536]{0}', space=vmem, size = 0x10000, scoped, tag = 'output window, operand 1, single buffered']
    #allocation5 [shape = 's32[1]{0}', space=sflag, size = 0x4, scoped, tag = 'scoped memory for tpu_custom_call.1']
    %13 = vsyncpa [#allocation3], 0
    %14 = vsyncpa [#allocation5], 0
    // Predicated region
    $region2: #{tpu_custom_call.1} parent=1 // pred_check
      _
    $region3: #{tpu_custom_call.1} parent=1 // pred_check_branch
      %16 = sbr.rel (0) target = $region5
    $region4: #{tpu_custom_call.1} parent=1 // pred_region
      _
    $region5: #{tpu_custom_call.1} parent=1 // pred_fallthru
      _
    // Predicated region
    $region6: #{tpu_custom_call.1} parent=1 // pred_check
      _
    $region7: #{tpu_custom_call.1} parent=1 // pred_check_branch
      %18 = sbr.rel (0) target = $region9
    $region8: #{tpu_custom_call.1} parent=1 // pred_region
      _
    $region9: #{tpu_custom_call.1} parent=1 // pred_fallthru
      _
    // Predicated region
    $region10: #{tpu_custom_call.1} parent=1 // pred_check
      _
    $region11: #{tpu_custom_call.1} parent=1 // pred_check_branch
      %20 = sbr.rel (0) target = $region13
    $region12: #{tpu_custom_call.1} parent=1 // pred_region
      _
    $region13: #{tpu_custom_call.1} parent=1 // pred_fallthru
      _
    // Predicated region
    $region14: #{tpu_custom_call.1} parent=1 // pred_check
      _
    $region15: #{tpu_custom_call.1} parent=1 // pred_check_branch
      %22 = sbr.rel (0) target = $region17
    $region16: #{tpu_custom_call.1} parent=1 // pred_region
      _
    $region17: #{tpu_custom_call.1} parent=1 // pred_fallthru
      _
    // Predicated region
    $region18: #{tpu_custom_call.1} parent=1 // pred_check
      _
    $region19: #{tpu_custom_call.1} parent=1 // pred_check_branch
      %24 = sbr.rel (0) target = $region21
    $region20: #{tpu_custom_call.1} parent=1 // pred_region
      _
    $region21: #{tpu_custom_call.1} parent=1 // pred_fallthru
      _
    // Predicated region
    $region22: #{tpu_custom_call.1} parent=1 // pred_check
      _
    $region23: #{tpu_custom_call.1} parent=1 // pred_check_branch
      %26 = sbr.rel (0) target = $region25
    $region24: #{tpu_custom_call.1} parent=1 // pred_region
      _
    $region25: #{tpu_custom_call.1} parent=1 // pred_fallthru
      _
    %v27 = vld [vmem:[%s0] sm:$0xff]
    %v28 = vld [vmem:[%s0 + $0x8] sm:$0xff]
    %v29 = vld [vmem:[%s0 + $0x10] sm:$0xff]
    %v30 = vld [vmem:[%s0 + $0x18] sm:$0xff]
    %v31 = vld [vmem:[%s0 + $0x20] sm:$0xff]
    %v32 = vld [vmem:[%s0 + $0x28] sm:$0xff]
    %v33 = vld [vmem:[%s0 + $0x30] sm:$0xff]
    %v34 = vld [vmem:[%s0 + $0x38] sm:$0xff]
    %v35 = vld [vmem:[%s0 + $0x40] sm:$0xff]
    %v36 = vld [vmem:[%s0 + $0x48] sm:$0xff]
    %v37 = vld [vmem:[%s0 + $0x50] sm:$0xff]
    %v38 = vld [vmem:[%s0 + $0x58] sm:$0xff]
    %v39 = vld [vmem:[%s0 + $0x60] sm:$0xff]
    %v40 = vld [vmem:[%s0 + $0x68] sm:$0xff]
    %v41 = vld [vmem:[%s0 + $0x70] sm:$0xff]
    %v42 = vld [vmem:[%s0 + $0x78] sm:$0xff]
    %v43 = vld [vmem:[%s2] sm:$0xff]
    %v44 = vld [vmem:[%s3] sm:$0x1]
    %v46 = vperm.slane %v44, 0
    %vm48 = vcmask 64512
    %v50 = vsel %vm48, %v27, 0
    %v53 = vsel %vm48, %v28, 0
    %v56 = vsel %vm48, %v29, 0
    %v59 = vsel %vm48, %v30, 0
    %v62 = vsel %vm48, %v31, 0
    %v65 = vsel %vm48, %v32, 0
    %v68 = vsel %vm48, %v33, 0
    %v71 = vsel %vm48, %v34, 0
    %v74 = vsel %vm48, %v35, 0
    %v77 = vsel %vm48, %v36, 0
    %v80 = vsel %vm48, %v37, 0
    %v83 = vsel %vm48, %v38, 0
    %v86 = vsel %vm48, %v39, 0
    %v89 = vsel %vm48, %v40, 0
    %v92 = vsel %vm48, %v41, 0
    %v95 = vsel %vm48, %v42, 0
    %97 = vmatpush.msra.mxu0 0.0
    %98 = vmatpush.msra.mxu0 0.0
    %99 = vmatpush.msra.mxu0 0.0
    %100 = vmatpush.msra.mxu0 0.0
    %101 = vmatpush.msra.mxu0 0.0
    %102 = vmatpush.msra.mxu0 0.0
    %103 = vmatpush.msra.mxu0 0.0
    %104 = vmatpush.msra.mxu0 0.0
    %105 = vmatpush.msra.mxu0 0.0
    %106 = vmatpush.msra.mxu0 0.0
    %107 = vmatpush.msra.mxu0 0.0
    %108 = vmatpush.msra.mxu0 0.0
    %109 = vmatpush.msra.mxu0 0.0
    %110 = vmatpush.msra.mxu0 0.0
    %111 = vmatpush.msra.mxu0 0.0
    %112 = vmatpush.msra.mxu0 %v43
    %113 = vmatmul.f32.gmra.mxu0 %v50
    %v114 = vpop.f32.mrf.mxu0
    %v115 = vadd.f32 %v46, %v114
    %116 = vmatmul.f32.gmra.mxu0 %v53
    %v117 = vpop.f32.mrf.mxu0
    %v118 = vadd.f32 %v46, %v117
    %119 = vmatmul.f32.gmra.mxu0 %v56
    %v120 = vpop.f32.mrf.mxu0
    %v121 = vadd.f32 %v46, %v120
    %122 = vmatmul.f32.gmra.mxu0 %v59
    %v123 = vpop.f32.mrf.mxu0
    %v124 = vadd.f32 %v46, %v123
    %125 = vmatmul.f32.gmra.mxu0 %v62
    %v126 = vpop.f32.mrf.mxu0
    %v127 = vadd.f32 %v46, %v126
    %128 = vmatmul.f32.gmra.mxu0 %v65
    %v129 = vpop.f32.mrf.mxu0
    %v130 = vadd.f32 %v46, %v129
    %131 = vmatmul.f32.gmra.mxu0 %v68
    %v132 = vpop.f32.mrf.mxu0
    %v133 = vadd.f32 %v46, %v132
    %134 = vmatmul.f32.gmra.mxu0 %v71
    %v135 = vpop.f32.mrf.mxu0
    %v136 = vadd.f32 %v46, %v135
    %137 = vmatmul.f32.gmra.mxu0 %v74
    %v138 = vpop.f32.mrf.mxu0
    %v139 = vadd.f32 %v46, %v138
    %140 = vmatmul.f32.gmra.mxu0 %v77
    %v141 = vpop.f32.mrf.mxu0
    %v142 = vadd.f32 %v46, %v141
    %143 = vmatmul.f32.gmra.mxu0 %v80
    %v144 = vpop.f32.mrf.mxu0
    %v145 = vadd.f32 %v46, %v144
    %146 = vmatmul.f32.gmra.mxu0 %v83
    %v147 = vpop.f32.mrf.mxu0
    %v148 = vadd.f32 %v46, %v147
    %149 = vmatmul.f32.gmra.mxu0 %v86
    %v150 = vpop.f32.mrf.mxu0
    %v151 = vadd.f32 %v46, %v150
    %152 = vmatmul.f32.gmra.mxu0 %v89
    %v153 = vpop.f32.mrf.mxu0
    %v154 = vadd.f32 %v46, %v153
    %155 = vmatmul.f32.gmra.mxu0 %v92
    %v156 = vpop.f32.mrf.mxu0
    %v157 = vadd.f32 %v46, %v156
    %158 = vmatmul.f32.gmra.mxu0 %v95
    %v159 = vpop.f32.mrf.mxu0
    %v160 = vadd.f32 %v46, %v159
    %161 = vdwg.mxu0
    %v162 = vmax.f32 %v115, 0.0
    %v163 = vmax.f32 %v118, 0.0
    %v164 = vmax.f32 %v121, 0.0
    %v165 = vmax.f32 %v124, 0.0
    %v166 = vmax.f32 %v127, 0.0
    %v167 = vmax.f32 %v130, 0.0
    %v168 = vmax.f32 %v133, 0.0
    %v169 = vmax.f32 %v136, 0.0
    %v170 = vmax.f32 %v139, 0.0
    %v171 = vmax.f32 %v142, 0.0
    %v172 = vmax.f32 %v145, 0.0
    %v173 = vmax.f32 %v148, 0.0
    %v174 = vmax.f32 %v151, 0.0
    %v175 = vmax.f32 %v154, 0.0
    %v176 = vmax.f32 %v157, 0.0
    %v177 = vmax.f32 %v160, 0.0
    %v178 = vld [vmem:[%s4] sm:$0xff]
    %v180 = vsel %vm48, %v162, 0
    %v183 = vsel %vm48, %v163, 0
    %v186 = vsel %vm48, %v164, 0
    %v189 = vsel %vm48, %v165, 0
    %v192 = vsel %vm48, %v166, 0
    %v195 = vsel %vm48, %v167, 0
    %v198 = vsel %vm48, %v168, 0
    %v201 = vsel %vm48, %v169, 0
    %v204 = vsel %vm48, %v170, 0
    %v207 = vsel %vm48, %v171, 0
    %v210 = vsel %vm48, %v172, 0
    %v213 = vsel %vm48, %v173, 0
    %v216 = vsel %vm48, %v174, 0
    %v219 = vsel %vm48, %v175, 0
    %v222 = vsel %vm48, %v176, 0
    %v225 = vsel %vm48, %v177, 0
    %227 = vmatpush.msra.mxu0 0.0
    %228 = vmatpush.msra.mxu0 0.0
    %229 = vmatpush.msra.mxu0 0.0
    %230 = vmatpush.msra.mxu0 0.0
    %231 = vmatpush.msra.mxu0 0.0
    %232 = vmatpush.msra.mxu0 0.0
    %233 = vmatpush.msra.mxu0 0.0
    %234 = vmatpush.msra.mxu0 0.0
    %235 = vmatpush.msra.mxu0 0.0
    %236 = vmatpush.msra.mxu0 0.0
    %237 = vmatpush.msra.mxu0 0.0
    %238 = vmatpush.msra.mxu0 0.0
    %239 = vmatpush.msra.mxu0 0.0
    %240 = vmatpush.msra.mxu0 0.0
    %241 = vmatpush.msra.mxu0 0.0
    %242 = vmatpush.msra.mxu0 %v178
    %243 = vmatmul.f32.gmra.mxu0 %v180
    %v244 = vpop.f32.mrf.mxu0
    %v245 = vadd.f32 0.0, %v244
    %246 = vmatmul.f32.gmra.mxu0 %v183
    %v247 = vpop.f32.mrf.mxu0
    %v248 = vadd.f32 0.0, %v247
    %249 = vmatmul.f32.gmra.mxu0 %v186
    %v250 = vpop.f32.mrf.mxu0
    %v251 = vadd.f32 0.0, %v250
    %252 = vmatmul.f32.gmra.mxu0 %v189
    %v253 = vpop.f32.mrf.mxu0
    %v254 = vadd.f32 0.0, %v253
    %255 = vmatmul.f32.gmra.mxu0 %v192
    %v256 = vpop.f32.mrf.mxu0
    %v257 = vadd.f32 0.0, %v256
    %258 = vmatmul.f32.gmra.mxu0 %v195
    %v259 = vpop.f32.mrf.mxu0
    %v260 = vadd.f32 0.0, %v259
    %261 = vmatmul.f32.gmra.mxu0 %v198
    %v262 = vpop.f32.mrf.mxu0
    %v263 = vadd.f32 0.0, %v262
    %264 = vmatmul.f32.gmra.mxu0 %v201
    %v265 = vpop.f32.mrf.mxu0
    %v266 = vadd.f32 0.0, %v265
    %267 = vmatmul.f32.gmra.mxu0 %v204
    %v268 = vpop.f32.mrf.mxu0
    %v269 = vadd.f32 0.0, %v268
    %270 = vmatmul.f32.gmra.mxu0 %v207
    %v271 = vpop.f32.mrf.mxu0
    %v272 = vadd.f32 0.0, %v271
    %273 = vmatmul.f32.gmra.mxu0 %v210
    %v274 = vpop.f32.mrf.mxu0
    %v275 = vadd.f32 0.0, %v274
    %276 = vmatmul.f32.gmra.mxu0 %v213
    %v277 = vpop.f32.mrf.mxu0
    %v278 = vadd.f32 0.0, %v277
    %279 = vmatmul.f32.gmra.mxu0 %v216
    %v280 = vpop.f32.mrf.mxu0
    %v281 = vadd.f32 0.0, %v280
    %282 = vmatmul.f32.gmra.mxu0 %v219
    %v283 = vpop.f32.mrf.mxu0
    %v284 = vadd.f32 0.0, %v283
    %285 = vmatmul.f32.gmra.mxu0 %v222
    %v286 = vpop.f32.mrf.mxu0
    %v287 = vadd.f32 0.0, %v286
    %288 = vmatmul.f32.gmra.mxu0 %v225
    %v289 = vpop.f32.mrf.mxu0
    %v290 = vadd.f32 0.0, %v289
    %291 = vdwg.mxu0
    %v292 = vld [vmem:[%s1] sm:$0xff]
    %v293 = vld [vmem:[%s1 + $0x8] sm:$0xff]
    %v294 = vld [vmem:[%s1 + $0x10] sm:$0xff]
    %v295 = vld [vmem:[%s1 + $0x18] sm:$0xff]
    %v296 = vld [vmem:[%s1 + $0x20] sm:$0xff]
    %v297 = vld [vmem:[%s1 + $0x28] sm:$0xff]
    %v298 = vld [vmem:[%s1 + $0x30] sm:$0xff]
    %v299 = vld [vmem:[%s1 + $0x38] sm:$0xff]
    %v300 = vld [vmem:[%s1 + $0x40] sm:$0xff]
    %v301 = vld [vmem:[%s1 + $0x48] sm:$0xff]
    %v302 = vld [vmem:[%s1 + $0x50] sm:$0xff]
    %v303 = vld [vmem:[%s1 + $0x58] sm:$0xff]
    %v304 = vld [vmem:[%s1 + $0x60] sm:$0xff]
    %v305 = vld [vmem:[%s1 + $0x68] sm:$0xff]
    %v306 = vld [vmem:[%s1 + $0x70] sm:$0xff]
    %v307 = vld [vmem:[%s1 + $0x78] sm:$0xff]
    %v308 = vld [vmem:[%s5] sm:$0xff]
    %v310 = vsel %vm48, %v292, 0
    %v313 = vsel %vm48, %v293, 0
    %v316 = vsel %vm48, %v294, 0
    %v319 = vsel %vm48, %v295, 0
    %v322 = vsel %vm48, %v296, 0
    %v325 = vsel %vm48, %v297, 0
    %v328 = vsel %vm48, %v298, 0
    %v331 = vsel %vm48, %v299, 0
    %v334 = vsel %vm48, %v300, 0
    %v337 = vsel %vm48, %v301, 0
    %v340 = vsel %vm48, %v302, 0
    %v343 = vsel %vm48, %v303, 0
    %v346 = vsel %vm48, %v304, 0
    %v349 = vsel %vm48, %v305, 0
    %v352 = vsel %vm48, %v306, 0
    %v355 = vsel %vm48, %v307, 0
    %357 = vmatpush.msra.mxu0 0.0
    %358 = vmatpush.msra.mxu0 0.0
    %359 = vmatpush.msra.mxu0 0.0
    %360 = vmatpush.msra.mxu0 0.0
    %361 = vmatpush.msra.mxu0 0.0
    %362 = vmatpush.msra.mxu0 0.0
    %363 = vmatpush.msra.mxu0 0.0
    %364 = vmatpush.msra.mxu0 0.0
    %365 = vmatpush.msra.mxu0 0.0
    %366 = vmatpush.msra.mxu0 0.0
    %367 = vmatpush.msra.mxu0 0.0
    %368 = vmatpush.msra.mxu0 0.0
    %369 = vmatpush.msra.mxu0 0.0
    %370 = vmatpush.msra.mxu0 0.0
    %371 = vmatpush.msra.mxu0 0.0
    %372 = vmatpush.msra.mxu0 %v308
    %373 = vmatmul.f32.gmra.mxu0 %v310
    %v374 = vpop.f32.mrf.mxu0
    %v375 = vadd.f32 0.0, %v374
    %376 = vmatmul.f32.gmra.mxu0 %v313
    %v377 = vpop.f32.mrf.mxu0
    %v378 = vadd.f32 0.0, %v377
    %379 = vmatmul.f32.gmra.mxu0 %v316
    %v380 = vpop.f32.mrf.mxu0
    %v381 = vadd.f32 0.0, %v380
    %382 = vmatmul.f32.gmra.mxu0 %v319
    %v383 = vpop.f32.mrf.mxu0
    %v384 = vadd.f32 0.0, %v383
    %385 = vmatmul.f32.gmra.mxu0 %v322
    %v386 = vpop.f32.mrf.mxu0
    %v387 = vadd.f32 0.0, %v386
    %388 = vmatmul.f32.gmra.mxu0 %v325
    %v389 = vpop.f32.mrf.mxu0
    %v390 = vadd.f32 0.0, %v389
    %391 = vmatmul.f32.gmra.mxu0 %v328
    %v392 = vpop.f32.mrf.mxu0
    %v393 = vadd.f32 0.0, %v392
    %394 = vmatmul.f32.gmra.mxu0 %v331
    %v395 = vpop.f32.mrf.mxu0
    %v396 = vadd.f32 0.0, %v395
    %397 = vmatmul.f32.gmra.mxu0 %v334
    %v398 = vpop.f32.mrf.mxu0
    %v399 = vadd.f32 0.0, %v398
    %400 = vmatmul.f32.gmra.mxu0 %v337
    %v401 = vpop.f32.mrf.mxu0
    %v402 = vadd.f32 0.0, %v401
    %403 = vmatmul.f32.gmra.mxu0 %v340
    %v404 = vpop.f32.mrf.mxu0
    %v405 = vadd.f32 0.0, %v404
    %406 = vmatmul.f32.gmra.mxu0 %v343
    %v407 = vpop.f32.mrf.mxu0
    %v408 = vadd.f32 0.0, %v407
    %409 = vmatmul.f32.gmra.mxu0 %v346
    %v410 = vpop.f32.mrf.mxu0
    %v411 = vadd.f32 0.0, %v410
    %412 = vmatmul.f32.gmra.mxu0 %v349
    %v413 = vpop.f32.mrf.mxu0
    %v414 = vadd.f32 0.0, %v413
    %415 = vmatmul.f32.gmra.mxu0 %v352
    %v416 = vpop.f32.mrf.mxu0
    %v417 = vadd.f32 0.0, %v416
    %418 = vmatmul.f32.gmra.mxu0 %v355
    %v419 = vpop.f32.mrf.mxu0
    %v420 = vadd.f32 0.0, %v419
    %421 = vdwg.mxu0
    %vm422 = vcmask 523264
    %423 = vst.msk [vmem:[#allocation2] sm:$0xff] %vm422, %v245
    %424 = vst.msk [vmem:[#allocation2 + $0x8] sm:$0xff] %vm422, %v248
    %425 = vst.msk [vmem:[#allocation2 + $0x10] sm:$0xff] %vm422, %v251
    %426 = vst.msk [vmem:[#allocation2 + $0x18] sm:$0xff] %vm422, %v254
    %427 = vst.msk [vmem:[#allocation2 + $0x20] sm:$0xff] %vm422, %v257
    %428 = vst.msk [vmem:[#allocation2 + $0x28] sm:$0xff] %vm422, %v260
    %429 = vst.msk [vmem:[#allocation2 + $0x30] sm:$0xff] %vm422, %v263
    %430 = vst.msk [vmem:[#allocation2 + $0x38] sm:$0xff] %vm422, %v266
    %431 = vst.msk [vmem:[#allocation2 + $0x40] sm:$0xff] %vm422, %v269
    %432 = vst.msk [vmem:[#allocation2 + $0x48] sm:$0xff] %vm422, %v272
    %433 = vst.msk [vmem:[#allocation2 + $0x50] sm:$0xff] %vm422, %v275
    %434 = vst.msk [vmem:[#allocation2 + $0x58] sm:$0xff] %vm422, %v278
    %435 = vst.msk [vmem:[#allocation2 + $0x60] sm:$0xff] %vm422, %v281
    %436 = vst.msk [vmem:[#allocation2 + $0x68] sm:$0xff] %vm422, %v284
    %437 = vst.msk [vmem:[#allocation2 + $0x70] sm:$0xff] %vm422, %v287
    %438 = vst.msk [vmem:[#allocation2 + $0x78] sm:$0xff] %vm422, %v290
    %455 = vrot.lane.b32.xlu0 %v375, 64
    %v456 = vpop.permute.xlu0 %455
    %457 = vrot.lane.b32.xlu0 %v378, 64
    %v458 = vpop.permute.xlu0 %457
    %459 = vrot.lane.b32.xlu0 %v381, 64
    %v460 = vpop.permute.xlu0 %459
    %461 = vrot.lane.b32.xlu0 %v384, 64
    %v462 = vpop.permute.xlu0 %461
    %463 = vrot.lane.b32.xlu0 %v387, 64
    %v464 = vpop.permute.xlu0 %463
    %465 = vrot.lane.b32.xlu0 %v390, 64
    %v466 = vpop.permute.xlu0 %465
    %467 = vrot.lane.b32.xlu0 %v393, 64
    %v468 = vpop.permute.xlu0 %467
    %469 = vrot.lane.b32.xlu0 %v396, 64
    %v470 = vpop.permute.xlu0 %469
    %471 = vrot.lane.b32.xlu0 %v399, 64
    %v472 = vpop.permute.xlu0 %471
    %473 = vrot.lane.b32.xlu0 %v402, 64
    %v474 = vpop.permute.xlu0 %473
    %475 = vrot.lane.b32.xlu0 %v405, 64
    %v476 = vpop.permute.xlu0 %475
    %477 = vrot.lane.b32.xlu0 %v408, 64
    %v478 = vpop.permute.xlu0 %477
    %479 = vrot.lane.b32.xlu0 %v411, 64
    %v480 = vpop.permute.xlu0 %479
    %481 = vrot.lane.b32.xlu0 %v414, 64
    %v482 = vpop.permute.xlu0 %481
    %483 = vrot.lane.b32.xlu0 %v417, 64
    %v484 = vpop.permute.xlu0 %483
    %485 = vrot.lane.b32.xlu0 %v420, 64
    %v486 = vpop.permute.xlu0 %485
    %vm503 = vcmask 1048064
    %504 = vst.msk [vmem:[#allocation2] sm:$0xff] %vm503, %v456
    %505 = vst.msk [vmem:[#allocation2 + $0x8] sm:$0xff] %vm503, %v458
    %506 = vst.msk [vmem:[#allocation2 + $0x10] sm:$0xff] %vm503, %v460
    %507 = vst.msk [vmem:[#allocation2 + $0x18] sm:$0xff] %vm503, %v462
    %508 = vst.msk [vmem:[#allocation2 + $0x20] sm:$0xff] %vm503, %v464
    %509 = vst.msk [vmem:[#allocation2 + $0x28] sm:$0xff] %vm503, %v466
    %510 = vst.msk [vmem:[#allocation2 + $0x30] sm:$0xff] %vm503, %v468
    %511 = vst.msk [vmem:[#allocation2 + $0x38] sm:$0xff] %vm503, %v470
    %512 = vst.msk [vmem:[#allocation2 + $0x40] sm:$0xff] %vm503, %v472
    %513 = vst.msk [vmem:[#allocation2 + $0x48] sm:$0xff] %vm503, %v474
    %514 = vst.msk [vmem:[#allocation2 + $0x50] sm:$0xff] %vm503, %v476
    %515 = vst.msk [vmem:[#allocation2 + $0x58] sm:$0xff] %vm503, %v478
    %516 = vst.msk [vmem:[#allocation2 + $0x60] sm:$0xff] %vm503, %v480
    %517 = vst.msk [vmem:[#allocation2 + $0x68] sm:$0xff] %vm503, %v482
    %518 = vst.msk [vmem:[#allocation2 + $0x70] sm:$0xff] %vm503, %v484
    %519 = vst.msk [vmem:[#allocation2 + $0x78] sm:$0xff] %vm503, %v486
    %536 = vrot.lane.b32.xlu0 %v245, 64
    %v537 = vpop.permute.xlu0 %536
    %538 = vrot.lane.b32.xlu0 %v248, 64
    %v539 = vpop.permute.xlu0 %538
    %540 = vrot.lane.b32.xlu0 %v251, 64
    %v541 = vpop.permute.xlu0 %540
    %542 = vrot.lane.b32.xlu0 %v254, 64
    %v543 = vpop.permute.xlu0 %542
    %544 = vrot.lane.b32.xlu0 %v257, 64
    %v545 = vpop.permute.xlu0 %544
    %546 = vrot.lane.b32.xlu0 %v260, 64
    %v547 = vpop.permute.xlu0 %546
    %548 = vrot.lane.b32.xlu0 %v263, 64
    %v549 = vpop.permute.xlu0 %548
    %550 = vrot.lane.b32.xlu0 %v266, 64
    %v551 = vpop.permute.xlu0 %550
    %552 = vrot.lane.b32.xlu0 %v269, 64
    %v553 = vpop.permute.xlu0 %552
    %554 = vrot.lane.b32.xlu0 %v272, 64
    %v555 = vpop.permute.xlu0 %554
    %556 = vrot.lane.b32.xlu0 %v275, 64
    %v557 = vpop.permute.xlu0 %556
    %558 = vrot.lane.b32.xlu0 %v278, 64
    %v559 = vpop.permute.xlu0 %558
    %560 = vrot.lane.b32.xlu0 %v281, 64
    %v561 = vpop.permute.xlu0 %560
    %562 = vrot.lane.b32.xlu0 %v284, 64
    %v563 = vpop.permute.xlu0 %562
    %564 = vrot.lane.b32.xlu0 %v287, 64
    %v565 = vpop.permute.xlu0 %564
    %566 = vrot.lane.b32.xlu0 %v290, 64
    %v567 = vpop.permute.xlu0 %566
    %vm584 = vcmask 261120
    %585 = vst.msk [vmem:[#allocation4] sm:$0xff] %vm584, %v537
    %586 = vst.msk [vmem:[#allocation4 + $0x8] sm:$0xff] %vm584, %v539
    %587 = vst.msk [vmem:[#allocation4 + $0x10] sm:$0xff] %vm584, %v541
    %588 = vst.msk [vmem:[#allocation4 + $0x18] sm:$0xff] %vm584, %v543
    %589 = vst.msk [vmem:[#allocation4 + $0x20] sm:$0xff] %vm584, %v545
    %590 = vst.msk [vmem:[#allocation4 + $0x28] sm:$0xff] %vm584, %v547
    %591 = vst.msk [vmem:[#allocation4 + $0x30] sm:$0xff] %vm584, %v549
    %592 = vst.msk [vmem:[#allocation4 + $0x38] sm:$0xff] %vm584, %v551
    %593 = vst.msk [vmem:[#allocation4 + $0x40] sm:$0xff] %vm584, %v553
    %594 = vst.msk [vmem:[#allocation4 + $0x48] sm:$0xff] %vm584, %v555
    %595 = vst.msk [vmem:[#allocation4 + $0x50] sm:$0xff] %vm584, %v557
    %596 = vst.msk [vmem:[#allocation4 + $0x58] sm:$0xff] %vm584, %v559
    %597 = vst.msk [vmem:[#allocation4 + $0x60] sm:$0xff] %vm584, %v561
    %598 = vst.msk [vmem:[#allocation4 + $0x68] sm:$0xff] %vm584, %v563
    %599 = vst.msk [vmem:[#allocation4 + $0x70] sm:$0xff] %vm584, %v565
    %600 = vst.msk [vmem:[#allocation4 + $0x78] sm:$0xff] %vm584, %v567
    %601 = vrot.lane.b32.xlu0 %v375, 32
    %v602 = vpop.permute.xlu0 %601
    %603 = vrot.lane.b32.xlu0 %v378, 32
    %v604 = vpop.permute.xlu0 %603
    %605 = vrot.lane.b32.xlu0 %v381, 32
    %v606 = vpop.permute.xlu0 %605
    %607 = vrot.lane.b32.xlu0 %v384, 32
    %v608 = vpop.permute.xlu0 %607
    %609 = vrot.lane.b32.xlu0 %v387, 32
    %v610 = vpop.permute.xlu0 %609
    %611 = vrot.lane.b32.xlu0 %v390, 32
    %v612 = vpop.permute.xlu0 %611
    %613 = vrot.lane.b32.xlu0 %v393, 32
    %v614 = vpop.permute.xlu0 %613
    %615 = vrot.lane.b32.xlu0 %v396, 32
    %v616 = vpop.permute.xlu0 %615
    %617 = vrot.lane.b32.xlu0 %v399, 32
    %v618 = vpop.permute.xlu0 %617
    %619 = vrot.lane.b32.xlu0 %v402, 32
    %v620 = vpop.permute.xlu0 %619
    %621 = vrot.lane.b32.xlu0 %v405, 32
    %v622 = vpop.permute.xlu0 %621
    %623 = vrot.lane.b32.xlu0 %v408, 32
    %v624 = vpop.permute.xlu0 %623
    %625 = vrot.lane.b32.xlu0 %v411, 32
    %v626 = vpop.permute.xlu0 %625
    %627 = vrot.lane.b32.xlu0 %v414, 32
    %v628 = vpop.permute.xlu0 %627
    %629 = vrot.lane.b32.xlu0 %v417, 32
    %v630 = vpop.permute.xlu0 %629
    %631 = vrot.lane.b32.xlu0 %v420, 32
    %v632 = vpop.permute.xlu0 %631
    %vm649 = vcmask 785664
    %650 = vst.msk [vmem:[#allocation4] sm:$0xff] %vm649, %v602
    %651 = vst.msk [vmem:[#allocation4 + $0x8] sm:$0xff] %vm649, %v604
    %652 = vst.msk [vmem:[#allocation4 + $0x10] sm:$0xff] %vm649, %v606
    %653 = vst.msk [vmem:[#allocation4 + $0x18] sm:$0xff] %vm649, %v608
    %654 = vst.msk [vmem:[#allocation4 + $0x20] sm:$0xff] %vm649, %v610
    %655 = vst.msk [vmem:[#allocation4 + $0x28] sm:$0xff] %vm649, %v612
    %656 = vst.msk [vmem:[#allocation4 + $0x30] sm:$0xff] %vm649, %v614
    %657 = vst.msk [vmem:[#allocation4 + $0x38] sm:$0xff] %vm649, %v616
    %658 = vst.msk [vmem:[#allocation4 + $0x40] sm:$0xff] %vm649, %v618
    %659 = vst.msk [vmem:[#allocation4 + $0x48] sm:$0xff] %vm649, %v620
    %660 = vst.msk [vmem:[#allocation4 + $0x50] sm:$0xff] %vm649, %v622
    %661 = vst.msk [vmem:[#allocation4 + $0x58] sm:$0xff] %vm649, %v624
    %662 = vst.msk [vmem:[#allocation4 + $0x60] sm:$0xff] %vm649, %v626
    %663 = vst.msk [vmem:[#allocation4 + $0x68] sm:$0xff] %vm649, %v628
    %664 = vst.msk [vmem:[#allocation4 + $0x70] sm:$0xff] %vm649, %v630
    %665 = vst.msk [vmem:[#allocation4 + $0x78] sm:$0xff] %vm649, %v632
    %vm666 = vcmask 1048320
    %667 = vst.msk [vmem:[#allocation4] sm:$0xff] %vm666, 0.0
    %668 = vst.msk [vmem:[#allocation4 + $0x8] sm:$0xff] %vm666, 0.0
    %669 = vst.msk [vmem:[#allocation4 + $0x10] sm:$0xff] %vm666, 0.0
    %670 = vst.msk [vmem:[#allocation4 + $0x18] sm:$0xff] %vm666, 0.0
    %671 = vst.msk [vmem:[#allocation4 + $0x20] sm:$0xff] %vm666, 0.0
    %672 = vst.msk [vmem:[#allocation4 + $0x28] sm:$0xff] %vm666, 0.0
    %673 = vst.msk [vmem:[#allocation4 + $0x30] sm:$0xff] %vm666, 0.0
    %674 = vst.msk [vmem:[#allocation4 + $0x38] sm:$0xff] %vm666, 0.0
    %675 = vst.msk [vmem:[#allocation4 + $0x40] sm:$0xff] %vm666, 0.0
    %676 = vst.msk [vmem:[#allocation4 + $0x48] sm:$0xff] %vm666, 0.0
    %677 = vst.msk [vmem:[#allocation4 + $0x50] sm:$0xff] %vm666, 0.0
    %678 = vst.msk [vmem:[#allocation4 + $0x58] sm:$0xff] %vm666, 0.0
    %679 = vst.msk [vmem:[#allocation4 + $0x60] sm:$0xff] %vm666, 0.0
    %680 = vst.msk [vmem:[#allocation4 + $0x68] sm:$0xff] %vm666, 0.0
    %681 = vst.msk [vmem:[#allocation4 + $0x70] sm:$0xff] %vm666, 0.0
    %682 = vst.msk [vmem:[#allocation4 + $0x78] sm:$0xff] %vm666, 0.0
    // Predicated region
    $region26: #{tpu_custom_call.1} parent=1 // pred_check
      _
    $region27: #{tpu_custom_call.1} parent=1 // pred_check_branch
      %684 = sbr.rel (0) target = $region29
    $region28: #{tpu_custom_call.1} parent=1 // pred_region
      %686 = vsyncadd [#allocation3], 0
      %s687 = sshll.u32 [#allocation2], 4
      %s688 = int_to_ptr.vmem [resolvable:$true] %s687
      %s689 = sshll.u32 %s6, 4
      %s690 = int_to_ptr.hbm [resolvable:$true] %s689
      %695 = dma.vmem_to_hbm [thread:$0]  %s688, 2048, %s690, [#allocation3], 128, 128, 8
    $region29: #{tpu_custom_call.1} parent=1 // pred_fallthru
      _
    // Predicated region
    $region30: #{tpu_custom_call.1} parent=1 // pred_check
      _
    $region31: #{tpu_custom_call.1} parent=1 // pred_check_branch
      %697 = sbr.rel (0) target = $region33
    $region32: #{tpu_custom_call.1} parent=1 // pred_region
      %699 = vsyncadd [#allocation5], 0
      %s700 = sshll.u32 [#allocation4], 4
      %s701 = int_to_ptr.vmem [resolvable:$true] %s700
      %s702 = sshll.u32 %s7, 4
      %s703 = int_to_ptr.hbm [resolvable:$true] %s702
      %708 = dma.vmem_to_hbm [thread:$0]  %s701, 2048, %s703, [#allocation5], 128, 128, 8
    $region33: #{tpu_custom_call.1} parent=1 // pred_fallthru
      _
    // Predicated region
    $region34: #{tpu_custom_call.1} parent=1 // pred_check
      _
    $region35: #{tpu_custom_call.1} parent=1 // pred_check_branch
      %710 = sbr.rel (0) target = $region37
    $region36: #{tpu_custom_call.1} parent=1 // pred_region
      %712 = dma.done [#allocation3], 2048
    $region37: #{tpu_custom_call.1} parent=1 // pred_fallthru
      _
    // Predicated region
    $region38: #{tpu_custom_call.1} parent=1 // pred_check
      _
    $region39: #{tpu_custom_call.1} parent=1 // pred_check_branch
      %714 = sbr.rel (0) target = $region41
    $region40: #{tpu_custom_call.1} parent=1 // pred_region
      %716 = dma.done [#allocation5], 2048
    $region41: #{tpu_custom_call.1} parent=1 // pred_fallthru
      _
    %717 = vsyncpa [#allocation3], 1
    %718 = vsyncpa [#allocation5], 1

</llo_original>
